<compile_context>
chip_gen: v7x
topology: tpu7x:2x2x1
jax: 0.10.0
libtpu: 0.0.40
codegen_flags: <defaults>
</compile_context>

<pallas_src>
import functools

import jax
import jax.numpy as jnp
from jax.experimental import pallas as pl
from jax.experimental.pallas import tpu as pltpu


def pos_enc_kernel(x_ref, pe_ref, o_ref, *, batch):
    # x_ref, o_ref : (tile_s, B*D) VMEM tiles; pe_ref : (tile_s, D).
    # Replicate the positional rows across the batch in VMEM (matches the
    # x.reshape(S, B*D) layout where index = b*D + d).
    o_ref[...] = x_ref[...] + jnp.tile(pe_ref[...], (1, batch))
    # TODO(synk): nn.Dropout(p=0.1) is identity in eval mode; training-mode
    # stochastic dropout (pltpu.prng_seed + prng_random_bits mask) not emitted.


def _is_multicore_tpu():
    """True on parts with 2 TensorCores per chip (v7x); False otherwise."""
    try:
        kind = jax.devices()[0].device_kind.lower()
    except Exception:
        return False
    return "v7" in kind


def _choose_tile_s(S, row_bytes, itemsize, multicore):
    """Pick a sublane-packing-aligned row tile sized for HBM streaming."""
    # 2 streamed arrays x 2 pipeline buffers: 2 MiB blocks are safe on v5e's
    # 16 MiB default scoped VMEM; on v7x use 4 MiB to amortize step overhead.
    target_block_bytes = (4 << 20) if multicore else (2 << 20)
    tile_s = max(1, min(S, target_block_bytes // max(row_bytes, 1)))
    # Give the megacore at least 2 parallel grid steps when the sequence allows
    # (only worthwhile on 2-TC parts; on single-TC chips it is a serial loop).
    if multicore and tile_s >= S and S >= 16:
        tile_s = (S + 1) // 2
    # Align to the dtype's sublane packing: 8 for f32, 16 for bf16, 32 for i8.
    align = max(8, 32 // max(itemsize, 1))
    if tile_s >= align:
        tile_s = (tile_s // align) * align
    return tile_s


def positional_encoding(x, pe_table):
    """x: (S, B, D); pe_table: (max_len, D). Returns x + pe_table[:S][:, None, :]."""
    S, B, D = x.shape
    max_len = pe_table.shape[0]
    if S > max_len:
        raise ValueError(f"sequence length {S} exceeds max_len {max_len}")

    BD = B * D
    x2 = x.reshape(S, BD)
    pe_rows = pe_table[:S].astype(x.dtype)  # (S, D) — raw rows, no pre-broadcast

    multicore = _is_multicore_tpu()
    tile_s = _choose_tile_s(S, BD * x.dtype.itemsize, x.dtype.itemsize, multicore)
    grid_s = pl.cdiv(S, tile_s)

    out2 = pl.pallas_call(
        functools.partial(pos_enc_kernel, batch=B),
        out_shape=jax.ShapeDtypeStruct((S, BD), x.dtype),
        grid_spec=pltpu.PrefetchScalarGridSpec(
            num_scalar_prefetch=0,
            grid=(grid_s,),
            in_specs=[
                pl.BlockSpec((tile_s, BD), lambda i: (i, 0)),
                pl.BlockSpec((tile_s, D), lambda i: (i, 0)),
            ],
            out_specs=pl.BlockSpec((tile_s, BD), lambda i: (i, 0)),
        ),
        compiler_params=pltpu.CompilerParams(
            dimension_semantics=("parallel",),
        ),
        # Reuse x's HBM buffer for the output.  Note: the caller must donate x
        # (jax.jit(..., donate_argnums=...)) for this to avoid a defensive copy.
        input_output_aliases={0: 0},
    )(x2, pe_rows)

    return out2.reshape(S, B, D)


def init_pos_embed_weight(key, max_len, d_model, dtype=jnp.float32):
    """Deterministic stand-in for nn.init.kaiming_normal_(weight, mode='fan_in').

    For a 2-D (max_len, d_model) tensor, PyTorch's fan_in = d_model and the
    default gain (leaky_relu, a=0) is sqrt(2), so std = sqrt(2 / d_model).
    """
    std = (2.0 / d_model) ** 0.5
    return (std * jax.random.normal(key, (max_len, d_model))).astype(dtype)


if __name__ == "__main__":
    d_model = 32
    max_len = 250
    seq = 8
    batch = 2

    key = jax.random.PRNGKey(0)
    k_x, k_w = jax.random.split(key)

    x = jax.random.normal(k_x, (seq, batch, d_model), dtype=jnp.float32)
    pe_table = init_pos_embed_weight(k_w, max_len, d_model)

    out = positional_encoding(x, pe_table)
    out = jax.block_until_ready(out)

    # Pure-JAX reference check of the forward pass (dropout = identity, eval).
    ref = x + pe_table[:seq][:, None, :]
    assert out.shape == (seq, batch, d_model)
    assert jnp.allclose(out, ref, atol=1e-6, rtol=1e-6)

    print("KERNEL_OK")
</pallas_src>

<mosaic_0001>
module attributes {stable_mosaic.version = 11 : i64} {
  func.func @pos_enc_kernel(%arg0: i32, %arg1: memref<8x64xf32, #tpu.memory_space<vmem>>, %arg2: memref<8x32xf32, #tpu.memory_space<vmem>>, %arg3: memref<8x64xf32, #tpu.memory_space<vmem>>) attributes {dimension_semantics = [#tpu.dimension_semantics<parallel>], iteration_bounds = array<i64: 1>, scalar_prefetch = 0 : i64, scratch_operands = 0 : i64, tpu.core_type = #tpu.core_type<tc>, window_params = [{transform_indices = @transform_0, window_bounds = array<i64: 8, 64>}, {transform_indices = @transform_1, window_bounds = array<i64: 8, 32>}, {transform_indices = @transform_2, window_bounds = array<i64: 8, 64>}]} {
    %c0 = arith.constant 0 : index
    %c0_0 = arith.constant 0 : index
    %0 = vector.load %arg1[%c0, %c0_0] : memref<8x64xf32, #tpu.memory_space<vmem>>, vector<8x64xf32>
    %c0_1 = arith.constant 0 : index
    %c0_2 = arith.constant 0 : index
    %1 = vector.load %arg2[%c0_1, %c0_2] : memref<8x32xf32, #tpu.memory_space<vmem>>, vector<8x32xf32>
    %2 = tpu.concatenate %1, %1 in 1 : vector<8x32xf32>, vector<8x32xf32> -> vector<8x64xf32>
    %3 = arith.addf %0, %2 : vector<8x64xf32>
    %c0_3 = arith.constant 0 : index
    %c0_4 = arith.constant 0 : index
    %4 = vector.load %arg3[%c0_3, %c0_4] : memref<8x64xf32, #tpu.memory_space<vmem>>, vector<8x64xf32>
    tpu.vector_store %arg3[%c0_3, %c0_4], %3 {strides = array<i32>} : memref<8x64xf32, #tpu.memory_space<vmem>>, vector<8x64xf32>,
    return
  }
  func.func @transform_0(%arg0: i32) -> (i32, i32) {
    %c0_i32 = arith.constant 0 : i32
    %c0_i32_0 = arith.constant 0 : i32
    return %arg0, %c0_i32 : i32, i32
  }
  func.func @transform_1(%arg0: i32) -> (i32, i32) {
    %c0_i32 = arith.constant 0 : i32
    %c0_i32_0 = arith.constant 0 : i32
    return %arg0, %c0_i32 : i32, i32
  }
  func.func @transform_2(%arg0: i32) -> (i32, i32) {
    %c0_i32 = arith.constant 0 : i32
    %c0_i32_0 = arith.constant 0 : i32
    return %arg0, %c0_i32 : i32, i32
  }
}

</mosaic_0001>

<llo_original>
// kernel: tpu_custom_call.1
$region0: #{tpu_custom_call.1}
  #allocation0 [shape = 'u32[]', space=smem, size = 0x4, offset = 0x4, fixed_abs, tag = 'smem constant byte address 0x4 - core index']
  #allocation1 [shape = 'u32[144,128]{1,0:T(1,128)}', space=vmem, size = 0x12000, scoped, tag = 'internal scratch']
  %s0 = inlined_call_operand.hbm [shape: f32[8,64], index: 0, kind: input, shape index: {}, may-alias: {0,2}]
  %s1 = inlined_call_operand.vmem [shape: f32[8,32], index: 1, kind: input, shape index: {}]
  %s2 = inlined_call_operand.hbm [shape: f32[8,64], index: 2, kind: output, shape index: {}, may-alias: {0,2}]
  %s3 = sld [smem:[#allocation0]]
  $region22: #{tpu_custom_call.1} parent=0
    _
  %s5 = ssub.s32 1, %s3
  %s6 = scalar_select 0, %s5, %s3
  $region1: #{tpu_custom_call.1} parent=0
    #allocation2 [shape = 'u8[4096]{0}', space=vmem, size = 0x1000, scoped, tag = 'input window, operand 0, single buffered']
    #allocation3 [shape = 's32[1]{0}', space=sflag, size = 0x4, scoped, tag = 'scoped memory for tpu_custom_call.1']
    #allocation4 [shape = 's32[1]{0}', space=sflag, size = 0x4, scoped, tag = 'scoped memory for tpu_custom_call.1']
    #allocation5 [shape = 'u8[4096]{0}', space=vmem, size = 0x1000, scoped, tag = 'output window, operand 0, single buffered']
    %7 = vsyncpa [#allocation3], 0
    %8 = vsyncpa [#allocation4], 0
    // Predicated region
    $region2: #{tpu_custom_call.1} parent=1 // pred_check
      _
    $region3: #{tpu_custom_call.1} parent=1 // pred_check_branch
      %10 = sbr.rel (0) target = $region5
    $region4: #{tpu_custom_call.1} parent=1 // pred_region
      %s12 = ssub.s32 128, 128
      %13 = vsyncadd [#allocation3], %s12
      %s15 = sshll.u32 [#allocation2], 4
      %s16 = int_to_ptr.vmem [resolvable:$true] %s15
      %18 = dma.hbm_to_vmem [thread:$0]  %s0, 128, %s16, [#allocation3]
    $region5: #{tpu_custom_call.1} parent=1 // pred_fallthru
      _
    // Predicated region
    $region6: #{tpu_custom_call.1} parent=1 // pred_check
      _
    $region7: #{tpu_custom_call.1} parent=1 // pred_check_branch
      %20 = sbr.rel (0) target = $region9
    $region8: #{tpu_custom_call.1} parent=1 // pred_region
      _
    $region9: #{tpu_custom_call.1} parent=1 // pred_fallthru
      _
    // Predicated region
    $region10: #{tpu_custom_call.1} parent=1 // pred_check
      _
    $region11: #{tpu_custom_call.1} parent=1 // pred_check_branch
      %22 = sbr.rel (0) target = $region13
    $region12: #{tpu_custom_call.1} parent=1 // pred_region
      %23 = dma.done [#allocation3], 128
    $region13: #{tpu_custom_call.1} parent=1 // pred_fallthru
      _
    %v24 = vld [vmem:[#allocation2] sm:$0xff]
    %v25 = vld [vmem:[%s1] sm:$0xff]
    %27 = vrot.lane.b32.xlu0 %v25, 32
    %v28 = vpop.permute.xlu0 %27
    %vm30 = vcmask 261120
    %v31 = vsel %vm30, %v25, %v28
    %v32 = vadd.f32 %v24, %v31
    %vm33 = vcmask 523264
    %34 = vst.msk [vmem:[#allocation5] sm:$0xff] %vm33, %v32
    // Predicated region
    $region14: #{tpu_custom_call.1} parent=1 // pred_check
      _
    $region15: #{tpu_custom_call.1} parent=1 // pred_check_branch
      %36 = sbr.rel (0) target = $region17
    $region16: #{tpu_custom_call.1} parent=1 // pred_region
      %s38 = ssub.s32 128, 128
      %39 = vsyncadd [#allocation4], %s38
      %s41 = sshll.u32 [#allocation5], 4
      %s42 = int_to_ptr.vmem [resolvable:$true] %s41
      %44 = dma.vmem_to_hbm [thread:$0]  %s42, 128, %s2, [#allocation4]
    $region17: #{tpu_custom_call.1} parent=1 // pred_fallthru
      _
    // Predicated region
    $region18: #{tpu_custom_call.1} parent=1 // pred_check
      _
    $region19: #{tpu_custom_call.1} parent=1 // pred_check_branch
      %46 = sbr.rel (0) target = $region21
    $region20: #{tpu_custom_call.1} parent=1 // pred_region
      %47 = dma.done [#allocation4], 128
    $region21: #{tpu_custom_call.1} parent=1 // pred_fallthru
      _
    %48 = vsyncpa [#allocation3], 1
    %49 = vsyncpa [#allocation4], 1

</llo_original>
